<compile_context>
chip_gen: v6e
topology: v6e:2x2x1
jax: 0.10.0
libtpu: 0.0.40
codegen_flags: <defaults>
</compile_context>

<pallas_src>
import math

import jax
import jax.numpy as jnp
from jax.experimental import pallas as pl
from jax.experimental.pallas import tpu as pltpu


def _round_up(x, m):
    return (x + m - 1) // m * m


def _linear_variance_kernel(x_ref, s2t_ref, bias_ref, eps_ref, o_ref):
    x = x_ref[...]                                    # (tm, IN)
    x2 = x * x
    # sigma is pre-squared & pre-transposed in the wrapper -> straight MXU matmul.
    var = jnp.dot(x2, s2t_ref[...], preferred_element_type=jnp.float32)   # (tm, tn)
    std = jnp.sqrt(1e-16 + var)
    o_ref[...] = (bias_ref[...] + eps_ref[...] * std).astype(o_ref.dtype)


def linear_variance(x, sigma, bias, eps, *, tm=256, tn=256):
    """Training-mode forward.

    x:     (B, IN)   f32
    sigma: (OUT, IN) f32  (PyTorch weight convention)
    bias:  (1, OUT)  f32
    eps:   (B, OUT)  f32  (N(0,1) for training; pass zeros for eval, or use
                           linear_variance_eval which skips the matmul entirely)
    """
    B, IN = x.shape
    OUT = sigma.shape[0]
    dtype = x.dtype

    # Loop-invariant work done once in the wrapper: square + transpose sigma.
    s2t = (sigma * sigma).T                           # (IN, OUT)

    # Effective tiles: row tile 8-aligned, col tile lane-dense (multiple of 128).
    tm_e = min(tm, _round_up(B, 8))
    tn_e = min(tn, _round_up(OUT, 128))
    B_p = _round_up(B, tm_e)
    OUT_p = _round_up(OUT, tn_e)

    if B_p != B:
        x = jnp.pad(x, ((0, B_p - B), (0, 0)))
        eps = jnp.pad(eps, ((0, B_p - B), (0, 0)))
    if OUT_p != OUT:
        s2t = jnp.pad(s2t, ((0, 0), (0, OUT_p - OUT)))
        bias = jnp.pad(bias, ((0, 0), (0, OUT_p - OUT)))
        eps = jnp.pad(eps, ((0, 0), (0, OUT_p - OUT)))

    grid = (B_p // tm_e, OUT_p // tn_e)

    # Explicit VMEM budget: double-buffered x / eps / out tiles + sigma / bias tiles.
    tile_bytes = 4 * (tm_e * IN + IN * tn_e + tn_e + 2 * tm_e * tn_e)
    vmem_limit = int(min(max(4 * tile_bytes, 32 << 20), 96 << 20))

    out_p = pl.pallas_call(
        _linear_variance_kernel,
        out_shape=jax.ShapeDtypeStruct((B_p, OUT_p), dtype),
        grid_spec=pltpu.PrefetchScalarGridSpec(
            num_scalar_prefetch=0,
            grid=grid,
            in_specs=[
                pl.BlockSpec((tm_e, IN), lambda i, j: (i, 0)),    # x row tile
                pl.BlockSpec((IN, tn_e), lambda i, j: (0, j)),    # sigma^2 (pre-T) col tile
                pl.BlockSpec((1, tn_e), lambda i, j: (0, j)),     # bias col tile
                pl.BlockSpec((tm_e, tn_e), lambda i, j: (i, j)),  # eps tile
            ],
            out_specs=pl.BlockSpec((tm_e, tn_e), lambda i, j: (i, j)),
        ),
        compiler_params=pltpu.CompilerParams(
            dimension_semantics=("parallel", "parallel"),
            vmem_limit_bytes=vmem_limit,
        ),
    )(x, s2t, bias, eps)

    return out_p[:B, :OUT]


def linear_variance_eval(x, sigma, bias):
    """Eval mode (eps == 0): output is just the bias broadcast — skip the matmul."""
    B = x.shape[0]
    OUT = sigma.shape[0]
    return jnp.broadcast_to(bias, (B, OUT)).astype(x.dtype)


def linear_variance_ref(x, sigma, bias, eps):
    """Pure-JAX reference mirroring the PyTorch forward."""
    lrt_std = jnp.sqrt(1e-16 + (x * x) @ (sigma * sigma).T)
    return bias + eps * lrt_std


if __name__ == "__main__":
    # Small shapes implied by the module: Linear(in_features -> out_features).
    B, IN, OUT = 16, 32, 16
    key = jax.random.PRNGKey(0)
    k_x, k_sigma, k_eps = jax.random.split(key, 3)

    # Deterministic parameter init matching reset_parameters():
    #   sigma ~ U(-stdv, stdv), stdv = 1/sqrt(in_features); bias = 0.
    stdv = 1.0 / math.sqrt(IN)
    sigma = jax.random.uniform(k_sigma, (OUT, IN), jnp.float32, minval=-stdv, maxval=stdv)
    bias = jnp.zeros((1, OUT), jnp.float32)
    x = jax.random.normal(k_x, (B, IN), jnp.float32)

    # Training mode: eps ~ N(0,1) (deterministic via PRNGKey).
    eps_train = jax.random.normal(k_eps, (B, OUT), jnp.float32)
    eps_eval = jnp.zeros((B, OUT), jnp.float32)

    out_train = jax.block_until_ready(linear_variance(x, sigma, bias, eps_train))
    ref_train = linear_variance_ref(x, sigma, bias, eps_train)
    assert out_train.shape == (B, OUT)
    assert jnp.allclose(out_train, ref_train, atol=1e-5, rtol=1e-5)

    # Eval mode: early-out (bias broadcast) must match the eps=0 reference.
    out_eval = jax.block_until_ready(linear_variance_eval(x, sigma, bias))
    ref_eval = linear_variance_ref(x, sigma, bias, eps_eval)
    assert out_eval.shape == (B, OUT)
    assert jnp.allclose(out_eval, ref_eval, atol=1e-5, rtol=1e-5)

    # Exercise the remainder / padding path: batch not a multiple of 8-aligned tile.
    B2 = 20
    x2 = jax.random.normal(jax.random.PRNGKey(1), (B2, IN), jnp.float32)
    eps2 = jax.random.normal(jax.random.PRNGKey(2), (B2, OUT), jnp.float32)
    out2 = jax.block_until_ready(linear_variance(x2, sigma, bias, eps2))
    ref2 = linear_variance_ref(x2, sigma, bias, eps2)
    assert out2.shape == (B2, OUT)
    assert jnp.allclose(out2, ref2, atol=1e-5, rtol=1e-5)

    print("KERNEL_OK")
</pallas_src>

<mosaic_0001>
module attributes {stable_mosaic.version = 11 : i64} {
  func.func @_linear_variance_kernel(%arg0: i32, %arg1: i32, %arg2: memref<16x32xf32, #tpu.memory_space<vmem>>, %arg3: memref<32x128xf32, #tpu.memory_space<vmem>>, %arg4: memref<1x128xf32, #tpu.memory_space<vmem>>, %arg5: memref<16x128xf32, #tpu.memory_space<vmem>>, %arg6: memref<16x128xf32, #tpu.memory_space<vmem>>) attributes {dimension_semantics = [#tpu.dimension_semantics<parallel>, #tpu.dimension_semantics<parallel>], iteration_bounds = array<i64: 1, 1>, scalar_prefetch = 0 : i64, scratch_operands = 0 : i64, tpu.core_type = #tpu.core_type<tc>, window_params = [{transform_indices = @transform_0, window_bounds = array<i64: 16, 32>}, {transform_indices = @transform_1, window_bounds = array<i64: 32, 128>}, {transform_indices = @transform_2, window_bounds = array<i64: 1, 128>}, {transform_indices = @transform_3, window_bounds = array<i64: 16, 128>}, {transform_indices = @transform_4, window_bounds = array<i64: 16, 128>}]} {
    %c0 = arith.constant 0 : index
    %c0_0 = arith.constant 0 : index
    %0 = vector.load %arg2[%c0, %c0_0] : memref<16x32xf32, #tpu.memory_space<vmem>>, vector<16x32xf32>
    %1 = arith.mulf %0, %0 : vector<16x32xf32>
    %c0_1 = arith.constant 0 : index
    %c0_2 = arith.constant 0 : index
    %2 = vector.load %arg3[%c0_1, %c0_2] : memref<32x128xf32, #tpu.memory_space<vmem>>, vector<32x128xf32>
    %cst = arith.constant dense<0.000000e+00> : vector<16x128xf32>
    %3 = tpu.matmul %1, %2, %cst {dimension_numbers = #tpu.dot_dimension_numbers<[1], [0], [0], [1], [0, 0, 1, 1], [], []>} : vector<16x32xf32>, vector<32x128xf32>, vector<16x128xf32> -> vector<16x128xf32>
    %cst_3 = arith.constant 1.000000e-16 : f32
    %4 = vector.broadcast %cst_3 : f32 to vector<16x128xf32>
    %5 = arith.addf %4, %3 : vector<16x128xf32>
    %6 = math.sqrt %5 : vector<16x128xf32>
    %c0_4 = arith.constant 0 : index
    %c0_5 = arith.constant 0 : index
    %7 = vector.load %arg4[%c0_4, %c0_5] : memref<1x128xf32, #tpu.memory_space<vmem>>, vector<1x128xf32>
    %c0_6 = arith.constant 0 : index
    %c0_7 = arith.constant 0 : index
    %8 = vector.load %arg5[%c0_6, %c0_7] : memref<16x128xf32, #tpu.memory_space<vmem>>, vector<16x128xf32>
    %9 = arith.mulf %8, %6 : vector<16x128xf32>
    %10 = vector.broadcast %7 : vector<1x128xf32> to vector<16x128xf32>
    %11 = arith.addf %10, %9 : vector<16x128xf32>
    %c0_8 = arith.constant 0 : index
    %c0_9 = arith.constant 0 : index
    %12 = vector.load %arg6[%c0_8, %c0_9] : memref<16x128xf32, #tpu.memory_space<vmem>>, vector<16x128xf32>
    tpu.vector_store %arg6[%c0_8, %c0_9], %11 {strides = array<i32>} : memref<16x128xf32, #tpu.memory_space<vmem>>, vector<16x128xf32>,
    return
  }
  func.func @transform_0(%arg0: i32, %arg1: i32) -> (i32, i32) {
    %c0_i32 = arith.constant 0 : i32
    %c0_i32_0 = arith.constant 0 : i32
    return %arg0, %c0_i32 : i32, i32
  }
  func.func @transform_1(%arg0: i32, %arg1: i32) -> (i32, i32) {
    %c0_i32 = arith.constant 0 : i32
    %c0_i32_0 = arith.constant 0 : i32
    return %c0_i32, %arg1 : i32, i32
  }
  func.func @transform_2(%arg0: i32, %arg1: i32) -> (i32, i32) {
    %c0_i32 = arith.constant 0 : i32
    %c0_i32_0 = arith.constant 0 : i32
    return %c0_i32, %arg1 : i32, i32
  }
  func.func @transform_3(%arg0: i32, %arg1: i32) -> (i32, i32) {
    %c0_i32 = arith.constant 0 : i32
    return %arg0, %arg1 : i32, i32
  }
  func.func @transform_4(%arg0: i32, %arg1: i32) -> (i32, i32) {
    %c0_i32 = arith.constant 0 : i32
    return %arg0, %arg1 : i32, i32
  }
}

</mosaic_0001>

<llo_original>
// kernel: tpu_custom_call.1
$region0: #{tpu_custom_call.1}
  #allocation0 [shape = 'u32[]', space=smem, size = 0x4, offset = 0x4, fixed_abs, tag = 'smem constant byte address 0x4 - core index']
  #allocation1 [shape = 'u32[144,128]{1,0:T(1,128)}', space=vmem, size = 0x12000, scoped, tag = 'internal scratch']
  %s0 = inlined_call_operand.hbm [shape: f32[16,32], index: 0, kind: input, shape index: {}]
  %s1 = inlined_call_operand.hbm [shape: f32[32,128], index: 1, kind: input, shape index: {}]
  %s2 = inlined_call_operand.vmem [shape: f32[1,128], index: 2, kind: input, shape index: {}]
  %s3 = inlined_call_operand.hbm [shape: f32[16,128], index: 3, kind: input, shape index: {}]
  %s4 = inlined_call_operand.hbm [shape: f32[16,128], index: 4, kind: output, shape index: {}]
  %s5 = sld [smem:[#allocation0]]
  $region38: #{tpu_custom_call.1} parent=0
    _
  %s7 = ssub.s32 1, %s5
  %s8 = scalar_select 0, %s7, %s5
  $region1: #{tpu_custom_call.1} parent=0
    #allocation2 [shape = 'u8[8192]{0}', space=vmem, size = 0x2000, scoped, tag = 'input window, operand 0, single buffered']
    #allocation3 [shape = 's32[1]{0}', space=sflag, size = 0x4, scoped, tag = 'scoped memory for tpu_custom_call.1']
    #allocation4 [shape = 's32[1]{0}', space=sflag, size = 0x4, scoped, tag = 'scoped memory for tpu_custom_call.1']
    #allocation5 [shape = 'u8[16384]{0}', space=vmem, size = 0x4000, scoped, tag = 'input window, operand 1, single buffered']
    #allocation6 [shape = 's32[1]{0}', space=sflag, size = 0x4, scoped, tag = 'scoped memory for tpu_custom_call.1']
    #allocation7 [shape = 'u8[8192]{0}', space=vmem, size = 0x2000, scoped, tag = 'input window, operand 3, single buffered']
    #allocation8 [shape = 'u8[8192]{0}', space=vmem, size = 0x2000, scoped, tag = 'output window, operand 0, single buffered']
    %9 = vsyncpa [#allocation3], 0
    %10 = vsyncpa [#allocation6], 0
    %11 = vsyncpa [#allocation4], 0
    // Predicated region
    $region2: #{tpu_custom_call.1} parent=1 // pred_check
      _
    $region3: #{tpu_custom_call.1} parent=1 // pred_check_branch
      %13 = sbr.rel (0) target = $region5
    $region4: #{tpu_custom_call.1} parent=1 // pred_region
      %s15 = ssub.s32 256, 256
      %16 = vsyncadd [#allocation3], %s15
      %s17 = sshll.u32 [#allocation2], 4
      %s18 = int_to_ptr.vmem [resolvable:$true] %s17
      %23 = dma.hbm_to_vmem [thread:$0]  %s0, 256, %s18, [#allocation3], 128, 128, 8
    $region5: #{tpu_custom_call.1} parent=1 // pred_fallthru
      _
    // Predicated region
    $region6: #{tpu_custom_call.1} parent=1 // pred_check
      _
    $region7: #{tpu_custom_call.1} parent=1 // pred_check_branch
      %25 = sbr.rel (0) target = $region9
    $region8: #{tpu_custom_call.1} parent=1 // pred_region
      %s27 = ssub.s32 512, 512
      %28 = vsyncadd [#allocation6], %s27
      %s29 = sshll.u32 [#allocation5], 4
      %s30 = int_to_ptr.vmem [resolvable:$true] %s29
      %35 = dma.hbm_to_vmem [thread:$0]  %s1, 512, %s30, [#allocation6], 128, 128, 8
    $region9: #{tpu_custom_call.1} parent=1 // pred_fallthru
      _
    // Predicated region
    $region10: #{tpu_custom_call.1} parent=1 // pred_check
      _
    $region11: #{tpu_custom_call.1} parent=1 // pred_check_branch
      %37 = sbr.rel (0) target = $region13
    $region12: #{tpu_custom_call.1} parent=1 // pred_region
      _
    $region13: #{tpu_custom_call.1} parent=1 // pred_fallthru
      _
    // Predicated region
    $region14: #{tpu_custom_call.1} parent=1 // pred_check
      _
    $region15: #{tpu_custom_call.1} parent=1 // pred_check_branch
      %39 = sbr.rel (0) target = $region17
    $region16: #{tpu_custom_call.1} parent=1 // pred_region
      %s41 = ssub.s32 256, 256
      %42 = vsyncadd [#allocation6], %s41
      %s43 = sshll.u32 [#allocation7], 4
      %s44 = int_to_ptr.vmem [resolvable:$true] %s43
      %49 = dma.hbm_to_vmem [thread:$0]  %s3, 256, %s44, [#allocation6], 128, 128, 8
    $region17: #{tpu_custom_call.1} parent=1 // pred_fallthru
      _
    // Predicated region
    $region18: #{tpu_custom_call.1} parent=1 // pred_check
      _
    $region19: #{tpu_custom_call.1} parent=1 // pred_check_branch
      %51 = sbr.rel (0) target = $region21
    $region20: #{tpu_custom_call.1} parent=1 // pred_region
      %52 = dma.done [#allocation3], 256
    $region21: #{tpu_custom_call.1} parent=1 // pred_fallthru
      _
    // Predicated region
    $region22: #{tpu_custom_call.1} parent=1 // pred_check
      _
    $region23: #{tpu_custom_call.1} parent=1 // pred_check_branch
      %54 = sbr.rel (0) target = $region25
    $region24: #{tpu_custom_call.1} parent=1 // pred_region
      %55 = dma.done [#allocation6], 512
    $region25: #{tpu_custom_call.1} parent=1 // pred_fallthru
      _
    // Predicated region
    $region26: #{tpu_custom_call.1} parent=1 // pred_check
      _
    $region27: #{tpu_custom_call.1} parent=1 // pred_check_branch
      %57 = sbr.rel (0) target = $region29
    $region28: #{tpu_custom_call.1} parent=1 // pred_region
      %58 = dma.done [#allocation6], 256
    $region29: #{tpu_custom_call.1} parent=1 // pred_fallthru
      _
    %v59 = vld [vmem:[#allocation2] sm:$0xff]
    %v60 = vld [vmem:[#allocation2 + $0x8] sm:$0xff]
    %v61 = vmul.f32 %v59, %v59
    %v62 = vmul.f32 %v60, %v60
    %v63 = vld [vmem:[#allocation5] sm:$0xff]
    %v64 = vld [vmem:[#allocation5 + $0x8] sm:$0xff]
    %v65 = vld [vmem:[#allocation5 + $0x10] sm:$0xff]
    %v66 = vld [vmem:[#allocation5 + $0x18] sm:$0xff]
    %vm67 = vcmask 261120
    %v69 = vsel %vm67, %v61, 0
    %v72 = vsel %vm67, %v62, 0
    %74 = vmatprep.subr.mxu0 0.0
    %75 = vmatpush1.msra.mxu0 0.0
    %76 = vmatprep.subr.mxu0 0.0
    %77 = vmatpush1.msra.mxu0 0.0
    %78 = vmatprep.subr.mxu0 0.0
    %79 = vmatpush1.msra.mxu0 0.0
    %80 = vmatprep.subr.mxu0 0.0
    %81 = vmatpush1.msra.mxu0 0.0
    %82 = vmatprep.subr.mxu0 0.0
    %83 = vmatpush1.msra.mxu0 0.0
    %84 = vmatprep.subr.mxu0 0.0
    %85 = vmatpush1.msra.mxu0 0.0
    %86 = vmatprep.subr.mxu0 0.0
    %87 = vmatpush1.msra.mxu0 0.0
    %88 = vmatprep.subr.mxu0 0.0
    %89 = vmatpush1.msra.mxu0 0.0
    %90 = vmatprep.subr.mxu0 0.0
    %91 = vmatpush1.msra.mxu0 0.0
    %92 = vmatprep.subr.mxu0 0.0
    %93 = vmatpush1.msra.mxu0 0.0
    %94 = vmatprep.subr.mxu0 0.0
    %95 = vmatpush1.msra.mxu0 0.0
    %96 = vmatprep.subr.mxu0 0.0
    %97 = vmatpush1.msra.mxu0 0.0
    %98 = vmatprep.subr.mxu0 0.0
    %99 = vmatpush1.msra.mxu0 %v66
    %100 = vmatprep.subr.mxu0 0.0
    %101 = vmatpush1.msra.mxu0 %v65
    %102 = vmatprep.subr.mxu0 0.0
    %103 = vmatpush1.msra.mxu0 %v64
    %104 = vmatprep.subr.mxu0 0.0
    %105 = vmatpush1.msra.mxu0 %v63
    %106 = vmatprep.subr.mxu0 0.0
    %107 = vmatpush2.msra.mxu0 0.0
    %108 = vmatprep.subr.mxu0 0.0
    %109 = vmatpush2.msra.mxu0 0.0
    %110 = vmatprep.subr.mxu0 0.0
    %111 = vmatpush2.msra.mxu0 0.0
    %112 = vmatprep.subr.mxu0 0.0
    %113 = vmatpush2.msra.mxu0 0.0
    %114 = vmatprep.subr.mxu0 0.0
    %115 = vmatpush2.msra.mxu0 0.0
    %116 = vmatprep.subr.mxu0 0.0
    %117 = vmatpush2.msra.mxu0 0.0
    %118 = vmatprep.subr.mxu0 0.0
    %119 = vmatpush2.msra.mxu0 0.0
    %120 = vmatprep.subr.mxu0 0.0
    %121 = vmatpush2.msra.mxu0 0.0
    %122 = vmatprep.subr.mxu0 0.0
    %123 = vmatpush2.msra.mxu0 0.0
    %124 = vmatprep.subr.mxu0 0.0
    %125 = vmatpush2.msra.mxu0 0.0
    %126 = vmatprep.subr.mxu0 0.0
    %127 = vmatpush2.msra.mxu0 0.0
    %128 = vmatprep.subr.mxu0 0.0
    %129 = vmatpush2.msra.mxu0 0.0
    %130 = vmatprep.subr.mxu0 0.0
    %131 = vmatpush2.msra.mxu0 0.0
    %132 = vmatprep.subr.mxu0 0.0
    %133 = vmatpush2.msra.mxu0 0.0
    %134 = vmatprep.subr.mxu0 0.0
    %135 = vmatpush2.msra.mxu0 0.0
    %136 = vmatprep.subr.mxu0 0.0
    %137 = vmatpush2.msra.mxu0 0.0
    %138 = vmatprep.mubr.f32.mxu0 0.0
    %139 = vmatmul.mubr.f32.gmra.mxu0 %v69
    %v140 = vpop.f32.mrf.mxu0
    %v141 = vadd.f32 1e-16, %v140
    %v142 = vpop.f32.mrf.mxu0
    %143 = vmatprep.mubr.f32.mxu0 0.0
    %144 = vmatmul.mubr.f32.gmra.mxu0 %v72
    %v145 = vpop.f32.mrf.mxu0
    %v146 = vadd.f32 1e-16, %v145
    %v147 = vpop.f32.mrf.mxu0
    %148 = vdwg.mxu0
    %v149 = vrsqrt.pop %v141
    %v150 = vmul.f32 %v141, %v149
    %vm151 = vcmp.eq.f32.partialorder %v141, inf
    %v152 = vsel %vm151, %v141, %v150
    %vm153 = vcmp.eq.f32.partialorder %v141, 0.0
    %v154 = vand.u32 %v141, 2147483648
    %v155 = vsel %vm153, %v154, %v152
    %v156 = vrsqrt.pop %v146
    %v157 = vmul.f32 %v146, %v156
    %vm158 = vcmp.eq.f32.partialorder %v146, inf
    %v159 = vsel %vm158, %v146, %v157
    %vm160 = vcmp.eq.f32.partialorder %v146, 0.0
    %v161 = vand.u32 %v146, 2147483648
    %v162 = vsel %vm160, %v161, %v159
    %v163 = vld [vmem:[%s2] sm:$0x1]
    %v164 = vld [vmem:[#allocation7] sm:$0xff]
    %v165 = vld [vmem:[#allocation7 + $0x8] sm:$0xff]
    %v166 = vmul.f32 %v164, %v155
    %v167 = vmul.f32 %v165, %v162
    %v169 = vlaneseq
    %v170 = vshrl.u32 %v169, 7
    %v171 = vsub.s32 0, %v170
    %v172 = vrot.slane %v163, %v171
    %v174 = vadd.f32 %v172, %v166
    %v175 = vadd.f32 %v172, %v167
    %176 = vst [vmem:[#allocation8] sm:$0xff] %v174
    %177 = vst [vmem:[#allocation8 + $0x8] sm:$0xff] %v175
    // Predicated region
    $region30: #{tpu_custom_call.1} parent=1 // pred_check
      _
    $region31: #{tpu_custom_call.1} parent=1 // pred_check_branch
      %179 = sbr.rel (0) target = $region33
    $region32: #{tpu_custom_call.1} parent=1 // pred_region
      %s181 = ssub.s32 256, 256
      %182 = vsyncadd [#allocation4], %s181
      %s183 = sshll.u32 [#allocation8], 4
      %s184 = int_to_ptr.vmem [resolvable:$true] %s183
      %189 = dma.vmem_to_hbm [thread:$0]  %s184, 256, %s4, [#allocation4], 128, 128, 8
    $region33: #{tpu_custom_call.1} parent=1 // pred_fallthru
      _
    // Predicated region
    $region34: #{tpu_custom_call.1} parent=1 // pred_check
      _
    $region35: #{tpu_custom_call.1} parent=1 // pred_check_branch
      %191 = sbr.rel (0) target = $region37
    $region36: #{tpu_custom_call.1} parent=1 // pred_region
      %192 = dma.done [#allocation4], 256
    $region37: #{tpu_custom_call.1} parent=1 // pred_fallthru
      _
    %193 = vsyncpa [#allocation3], 1
    %194 = vsyncpa [#allocation6], 1
    %195 = vsyncpa [#allocation4], 1

</llo_original>
